<compile_context>
chip_gen: v7x
topology: tpu7x:2x2x1
jax: 0.10.0
libtpu: 0.0.40
codegen_flags: <defaults>
</compile_context>

<pallas_src>
import functools

import jax
import jax.numpy as jnp
from jax import lax
from jax.experimental import pallas as pl
from jax.experimental.pallas import tpu as pltpu


def _round_up(v, m):
    return ((v + m - 1) // m) * m


def _cdiv(a, b):
    return (a + b - 1) // b


def _channel_attention_kernel(beta_ref, x_ref, o_ref, attn_ref, *opt_slab,
                              hw, hw_chunk, n_chunks, use_slab):
    # beta_ref: SMEM (1,) f32 scalar parameter
    # x_ref:    VMEM (G, C, hw_chunk) input chunk
    # o_ref:    VMEM (G, C, hw_chunk) output chunk (written in phase 1 only)
    # attn_ref: VMEM (G, C, C) f32: Gram accumulator, then softmax probabilities
    # slab_ref: VMEM (G, C, hw_ceil) f32 resident copy of x (only if use_slab)
    slab_ref = opt_slab[0] if use_slab else None
    phase = pl.program_id(1)
    k = pl.program_id(2)
    ragged = (hw % hw_chunk) != 0  # static

    @pl.when(jnp.logical_and(phase == 0, k == 0))
    def _init():
        attn_ref[...] = jnp.zeros_like(attn_ref)

    @pl.when(phase == 0)
    def _accumulate():
        xc = x_ref[...]                                        # (G, C, hw_chunk) f32
        if ragged:
            # Zero lanes past HW in the last chunk so the Gram stays exact
            # (out-of-bounds reads of a partial block are garbage).
            lane = lax.broadcasted_iota(jnp.int32, xc.shape, 2)
            xc = jnp.where(lane + k * hw_chunk < hw, xc, 0.0)
        if use_slab:
            start = pl.multiple_of(k * hw_chunk, hw_chunk)
            slab_ref[:, :, pl.ds(start, hw_chunk)] = xc
        xb = xc.astype(jnp.bfloat16)
        # attn += X_chunk @ X_chunk^T  (bf16 operands, f32 accumulation)
        attn_ref[...] += jnp.einsum("gcn,gdn->gcd", xb, xb,
                                    preferred_element_type=jnp.float32)

    # Softmax on the LAST phase-0 step so it overlaps the phase-1 prefetch.
    @pl.when(jnp.logical_and(phase == 0, k == n_chunks - 1))
    def _softmax():
        a = attn_ref[...]                                      # (G, C, C) f32
        # softmax(rowmax(a) - a) with a stable shift folds to exp(rowmin(a) - a).
        shift = jnp.min(a, axis=-1, keepdims=True)
        e = jnp.exp(shift - a)
        denom = jnp.sum(e, axis=-1, keepdims=True)
        attn_ref[...] = e * pl.reciprocal(denom, approx=True)  # reuse as probs

    @pl.when(phase == 1)
    def _apply():
        if use_slab:
            start = pl.multiple_of(k * hw_chunk, hw_chunk)
            xc = slab_ref[:, :, pl.ds(start, hw_chunk)]        # (G, C, hw_chunk) f32
        else:
            xc = x_ref[...]
        p = attn_ref[...].astype(jnp.bfloat16)
        fe = jnp.einsum("gcd,gdn->gcn", p, xc.astype(jnp.bfloat16),
                        preferred_element_type=jnp.float32)
        o_ref[...] = (beta_ref[0] * fe + xc).astype(o_ref.dtype)


def _pick_config(B, C, HW, hw_chunk_override=None):
    c_pad = _round_up(C, 8)

    # Generation-aware VMEM budget (v7x: 64 MiB per TC; v5e/v6e: 128 MiB).
    try:
        cap = int(getattr(pltpu.get_tpu_info(), "vmem_capacity_bytes", 64 << 20))
    except Exception:
        cap = 64 << 20
    if cap >= (100 << 20):
        budget, target_tile = 100 << 20, 8 << 20      # v5e / v6e
    else:
        budget, target_tile = 48 << 20, 4 << 20       # v7x

    # Fold G batch elements per grid step when C is small (G divides B so there
    # are no partial blocks on the batch axis).
    g_cap = max(1, min(B, 256 // c_pad))
    G = 1
    for g in range(g_cap, 0, -1):
        if B % g == 0:
            G = g
            break

    hw_units = _cdiv(HW, 128)                 # HW in 128-lane units
    unit_bytes = G * c_pad * 128 * 4          # one 128-lane slice of one buffer
    attn_bytes = G * c_pad * _round_up(C, 128) * 4

    def vmem_need(units, with_slab):
        hw_ceil = _cdiv(HW, units * 128) * units * 128
        tiles = 4 * unit_bytes * units        # (2 in + 2 out) double buffers
        slab = G * c_pad * hw_ceil * 4 if with_slab else 0
        return tiles + attn_bytes + slab

    avail = budget - (4 << 20)                # headroom for compiler scratch

    if hw_chunk_override is not None:
        units = max(1, _round_up(hw_chunk_override, 128) // 128)
    else:
        units = max(1, min(hw_units, target_tile // unit_bytes))

    # Prefer the resident-slab mode (removes the second HBM read of x).
    use_slab = True
    while units > 4 and vmem_need(units, True) > avail:
        units -= 1
    if vmem_need(units, True) > avail:
        use_slab = False
        if hw_chunk_override is None:
            units = max(1, min(hw_units, target_tile // unit_bytes))
            while units > 1 and vmem_need(units, False) > avail:
                units -= 1

    hw_chunk = units * 128
    n_chunks = _cdiv(HW, hw_chunk)
    if n_chunks == 1:
        use_slab = False   # single chunk: the input block already stays resident
    return G, hw_chunk, n_chunks, use_slab, budget


def channel_attention(x, beta, *, _hw_chunk=None):
    """x: (B, C, H, W) float32, beta: (1,) float32 -> (B, C, H, W)."""
    B, C, H, W = x.shape
    HW = H * W
    G, hw_chunk, n_chunks, use_slab, vmem_budget = _pick_config(B, C, HW, _hw_chunk)
    n_groups = B // G

    x_flat = x.reshape(B, C, HW)   # free view, no HBM copy

    if use_slab:
        # Phase 1 reads from the VMEM slab, so pin the x block to the last
        # chunk during phase 1 (unchanged block index => no re-fetch DMA).
        x_index_map = lambda g, p, k: (g, 0, k * (1 - p) + (n_chunks - 1) * p)
    else:
        x_index_map = lambda g, p, k: (g, 0, k)
    # Output block pinned to chunk 0 during phase 0 (never written there); the
    # block is only flushed after phase-1 k==0 has fully written it, because the
    # block index does not change until then.
    o_index_map = lambda g, p, k: (g, 0, p * k)

    scratch = [pltpu.VMEM((G, C, C), jnp.float32)]       # Gram accumulator / probs
    if use_slab:
        scratch.append(pltpu.VMEM((G, C, n_chunks * hw_chunk), jnp.float32))

    kernel = functools.partial(_channel_attention_kernel, hw=HW,
                               hw_chunk=hw_chunk, n_chunks=n_chunks,
                               use_slab=use_slab)

    out_flat = pl.pallas_call(
        kernel,
        out_shape=jax.ShapeDtypeStruct((B, C, HW), x.dtype),
        grid_spec=pltpu.PrefetchScalarGridSpec(
            num_scalar_prefetch=0,
            grid=(n_groups, 2, n_chunks),
            in_specs=[
                pl.BlockSpec(memory_space=pltpu.MemorySpace.SMEM),   # beta (1,)
                pl.BlockSpec((G, C, hw_chunk), x_index_map),          # x chunk
            ],
            out_specs=pl.BlockSpec((G, C, hw_chunk), o_index_map),
            scratch_shapes=scratch,
        ),
        compiler_params=pltpu.CompilerParams(
            dimension_semantics=("parallel", "arbitrary", "arbitrary"),
            vmem_limit_bytes=int(vmem_budget),
        ),
    )(beta, x_flat)

    return out_flat.reshape(B, C, H, W)


def channel_attention_ref(x, beta):
    """Pure-JAX f32 reference mirroring the PyTorch forward exactly."""
    B, C, H, W = x.shape
    feat_a = x.reshape(B, C, H * W)
    attn = jnp.einsum("bcn,bdn->bcd", feat_a, feat_a)
    attn_new = jnp.max(attn, axis=-1, keepdims=True) - attn
    p = jax.nn.softmax(attn_new, axis=-1)
    feat_e = jnp.einsum("bcd,bdn->bcn", p, feat_a).reshape(B, C, H, W)
    return beta[0] * feat_e + x


if __name__ == "__main__":
    key = jax.random.PRNGKey(0)
    B, C, H, W = 2, 4, 16, 16
    x = 0.1 * jax.random.normal(key, (B, C, H, W), dtype=jnp.float32)

    # Parameter per __init__: self.beta = nn.Parameter(torch.zeros(1))
    beta0 = jnp.zeros((1,), dtype=jnp.float32)
    out0 = jax.block_until_ready(channel_attention(x, beta0))
    ref0 = channel_attention_ref(x, beta0)
    assert out0.shape == (B, C, H, W)
    assert jnp.allclose(out0, ref0, atol=1e-5, rtol=1e-5)

    # Non-zero beta so the (bf16-MXU) attention path actually contributes.
    beta1 = jnp.full((1,), 0.5, dtype=jnp.float32)
    out1 = jax.block_until_ready(channel_attention(x, beta1))
    ref1 = channel_attention_ref(x, beta1)
    assert jnp.allclose(out1, ref1, atol=2e-2, rtol=2e-2), float(
        jnp.max(jnp.abs(out1 - ref1)))

    # Ragged HW handled fully in-kernel (no host-side pad/slice), single chunk.
    x2 = 0.1 * jax.random.normal(jax.random.PRNGKey(1), (2, 4, 10, 10),
                                 dtype=jnp.float32)
    out2 = jax.block_until_ready(channel_attention(x2, beta1))
    ref2 = channel_attention_ref(x2, beta1)
    assert out2.shape == x2.shape
    assert jnp.allclose(out2, ref2, atol=2e-2, rtol=2e-2), float(
        jnp.max(jnp.abs(out2 - ref2)))

    # Multi-chunk + resident-slab + ragged tail path (forced small chunk).
    x3 = 0.1 * jax.random.normal(jax.random.PRNGKey(2), (2, 16, 24, 24),
                                 dtype=jnp.float32)
    out3 = jax.block_until_ready(channel_attention(x3, beta1, _hw_chunk=256))
    ref3 = channel_attention_ref(x3, beta1)
    assert jnp.allclose(out3, ref3, atol=2e-2, rtol=2e-2), float(
        jnp.max(jnp.abs(out3 - ref3)))

    print("KERNEL_OK")
</pallas_src>

<mosaic_0001>
module attributes {stable_mosaic.version = 11 : i64} {
  func.func @_channel_attention_kernel(%arg0: i32, %arg1: i32, %arg2: i32, %arg3: memref<1xf32, #tpu.memory_space<smem>>, %arg4: memref<2x4x256xf32, #tpu.memory_space<vmem>>, %arg5: memref<2x4x256xf32, #tpu.memory_space<vmem>>, %arg6: memref<2x4x4xf32, #tpu.memory_space<vmem>>) attributes {dimension_semantics = [#tpu.dimension_semantics<parallel>, #tpu.dimension_semantics<arbitrary>, #tpu.dimension_semantics<arbitrary>], iteration_bounds = array<i64: 1, 2, 1>, scalar_prefetch = 0 : i64, scratch_operands = 1 : i64, tpu.core_type = #tpu.core_type<tc>, window_params = [{transform_indices = @transform_0, window_bounds = array<i64: 1>}, {transform_indices = @transform_1, window_bounds = array<i64: 2, 4, 256>}, {transform_indices = @transform_2, window_bounds = array<i64: 2, 4, 256>}]} {
    %c0_i32 = arith.constant 0 : i32
    %0 = arith.cmpi eq, %arg1, %c0_i32 : i32
    %c0_i32_0 = arith.constant 0 : i32
    %1 = arith.cmpi eq, %arg2, %c0_i32_0 : i32
    %2 = arith.andi %0, %1 : i1
    %3 = arith.extui %2 : i1 to i32
    %c0_i32_1 = arith.constant 0 : i32
    %4 = arith.cmpi ne, %3, %c0_i32_1 : i32
    scf.if %4 {
      %cst = arith.constant 0.000000e+00 : f32
      %16 = vector.broadcast %cst : f32 to vector<2x4x4xf32>
      %c0 = arith.constant 0 : index
      %c0_8 = arith.constant 0 : index
      %c0_9 = arith.constant 0 : index
      %17 = vector.load %arg6[%c0, %c0_8, %c0_9] : memref<2x4x4xf32, #tpu.memory_space<vmem>>, vector<2x4x4xf32>
      tpu.vector_store %arg6[%c0, %c0_8, %c0_9], %16 {strides = array<i32>} : memref<2x4x4xf32, #tpu.memory_space<vmem>>, vector<2x4x4xf32>,
    } else {
    }
    %c0_i32_2 = arith.constant 0 : i32
    %5 = arith.cmpi eq, %arg1, %c0_i32_2 : i32
    %6 = arith.extui %5 : i1 to i32
    %c0_i32_3 = arith.constant 0 : i32
    %7 = arith.cmpi ne, %6, %c0_i32_3 : i32
    scf.if %7 {
      %c0 = arith.constant 0 : index
      %c0_8 = arith.constant 0 : index
      %c0_9 = arith.constant 0 : index
      %16 = vector.load %arg4[%c0, %c0_8, %c0_9] : memref<2x4x256xf32, #tpu.memory_space<vmem>>, vector<2x4x256xf32>
      %17 = arith.truncf %16 : vector<2x4x256xf32> to vector<2x4x256xbf16>
      %c0_10 = arith.constant 0 : index
      %c0_11 = arith.constant 0 : index
      %c0_12 = arith.constant 0 : index
      %18 = vector.load %arg6[%c0_10, %c0_11, %c0_12] : memref<2x4x4xf32, #tpu.memory_space<vmem>>, vector<2x4x4xf32>
      "tpu.trace_start"() <{level = 10 : i32, message = "gcn,gdn->gcd"}> : () -> ()
      %cst = arith.constant dense<0.000000e+00> : vector<2x4x4xf32>
      %19 = tpu.matmul %17, %17, %cst {dimension_numbers = #tpu.dot_dimension_numbers<[2], [2], [1], [1], [0, 0, 0, 1, 1, 1], [0], [0]>} : vector<2x4x256xbf16>, vector<2x4x256xbf16>, vector<2x4x4xf32> -> vector<2x4x4xf32>
      "tpu.trace_stop"() : () -> ()
      %20 = arith.addf %18, %19 : vector<2x4x4xf32>
      %c0_13 = arith.constant 0 : index
      %c0_14 = arith.constant 0 : index
      %c0_15 = arith.constant 0 : index
      %21 = vector.load %arg6[%c0_13, %c0_14, %c0_15] : memref<2x4x4xf32, #tpu.memory_space<vmem>>, vector<2x4x4xf32>
      tpu.vector_store %arg6[%c0_13, %c0_14, %c0_15], %20 {strides = array<i32>} : memref<2x4x4xf32, #tpu.memory_space<vmem>>, vector<2x4x4xf32>,
    } else {
    }
    %c0_i32_4 = arith.constant 0 : i32
    %8 = arith.cmpi eq, %arg1, %c0_i32_4 : i32
    %c0_i32_5 = arith.constant 0 : i32
    %9 = arith.cmpi eq, %arg2, %c0_i32_5 : i32
    %10 = arith.andi %8, %9 : i1
    %11 = arith.extui %10 : i1 to i32
    %c0_i32_6 = arith.constant 0 : i32
    %12 = arith.cmpi ne, %11, %c0_i32_6 : i32
    scf.if %12 {
      %c0 = arith.constant 0 : index
      %c0_8 = arith.constant 0 : index
      %c0_9 = arith.constant 0 : index
      %16 = vector.load %arg6[%c0, %c0_8, %c0_9] : memref<2x4x4xf32, #tpu.memory_space<vmem>>, vector<2x4x4xf32>
      %cst = arith.constant dense<0x7F800000> : vector<2x4xf32>
      %17 = vector.multi_reduction <minimumf>, %16, %cst [2] : vector<2x4x4xf32> to vector<2x4xf32>
      %18 = vector.shape_cast %17 : vector<2x4xf32> to vector<2x4x1xf32>
      %19 = vector.broadcast %18 : vector<2x4x1xf32> to vector<2x4x4xf32>
      %20 = arith.subf %19, %16 : vector<2x4x4xf32>
      %21 = math.exp %20 : vector<2x4x4xf32>
      %cst_10 = arith.constant dense<0.000000e+00> : vector<2x4xf32>
      %22 = vector.multi_reduction <add>, %21, %cst_10 [2] : vector<2x4x4xf32> to vector<2x4xf32>
      %23 = vector.shape_cast %22 : vector<2x4xf32> to vector<2x4x1xf32>
      %24 = tpu.reciprocal %23 {approx = true} : vector<2x4x1xf32> -> vector<2x4x1xf32>
      %25 = vector.broadcast %24 : vector<2x4x1xf32> to vector<2x4x4xf32>
      %26 = arith.mulf %21, %25 : vector<2x4x4xf32>
      %c0_11 = arith.constant 0 : index
      %c0_12 = arith.constant 0 : index
      %c0_13 = arith.constant 0 : index
      %27 = vector.load %arg6[%c0_11, %c0_12, %c0_13] : memref<2x4x4xf32, #tpu.memory_space<vmem>>, vector<2x4x4xf32>
      tpu.vector_store %arg6[%c0_11, %c0_12, %c0_13], %26 {strides = array<i32>} : memref<2x4x4xf32, #tpu.memory_space<vmem>>, vector<2x4x4xf32>,
    } else {
    }
    %c1_i32 = arith.constant 1 : i32
    %13 = arith.cmpi eq, %arg1, %c1_i32 : i32
    %14 = arith.extui %13 : i1 to i32
    %c0_i32_7 = arith.constant 0 : i32
    %15 = arith.cmpi ne, %14, %c0_i32_7 : i32
    scf.if %15 {
      %c0 = arith.constant 0 : index
      %c0_8 = arith.constant 0 : index
      %c0_9 = arith.constant 0 : index
      %16 = vector.load %arg4[%c0, %c0_8, %c0_9] : memref<2x4x256xf32, #tpu.memory_space<vmem>>, vector<2x4x256xf32>
      %c0_10 = arith.constant 0 : index
      %c0_11 = arith.constant 0 : index
      %c0_12 = arith.constant 0 : index
      %17 = vector.load %arg6[%c0_10, %c0_11, %c0_12] : memref<2x4x4xf32, #tpu.memory_space<vmem>>, vector<2x4x4xf32>
      %18 = arith.truncf %17 : vector<2x4x4xf32> to vector<2x4x4xbf16>
      %19 = arith.truncf %16 : vector<2x4x256xf32> to vector<2x4x256xbf16>
      "tpu.trace_start"() <{level = 10 : i32, message = "gcd,gdn->gcn"}> : () -> ()
      %cst = arith.constant dense<0.000000e+00> : vector<2x4x256xf32>
      %20 = tpu.matmul %18, %19, %cst {dimension_numbers = #tpu.dot_dimension_numbers<[2], [1], [1], [2], [0, 0, 0, 1, 1, 2], [0], [0]>} : vector<2x4x4xbf16>, vector<2x4x256xbf16>, vector<2x4x256xf32> -> vector<2x4x256xf32>
      "tpu.trace_stop"() : () -> ()
      %c0_13 = arith.constant 0 : index
      %21 = memref.load %arg3[%c0_13] : memref<1xf32, #tpu.memory_space<smem>>
      %22 = vector.broadcast %21 : f32 to vector<2x4x256xf32>
      %23 = arith.mulf %22, %20 : vector<2x4x256xf32>
      %24 = arith.addf %23, %16 : vector<2x4x256xf32>
      %c0_14 = arith.constant 0 : index
      %c0_15 = arith.constant 0 : index
      %c0_16 = arith.constant 0 : index
      %25 = vector.load %arg5[%c0_14, %c0_15, %c0_16] : memref<2x4x256xf32, #tpu.memory_space<vmem>>, vector<2x4x256xf32>
      tpu.vector_store %arg5[%c0_14, %c0_15, %c0_16], %24 {strides = array<i32>} : memref<2x4x256xf32, #tpu.memory_space<vmem>>, vector<2x4x256xf32>,
    } else {
    }
    return
  }
  func.func @transform_0(%arg0: i32, %arg1: i32, %arg2: i32) -> i32 {
    %c0_i32 = arith.constant 0 : i32
    %c0_i32_0 = arith.constant 0 : i32
    return %c0_i32 : i32
  }
  func.func @transform_1(%arg0: i32, %arg1: i32, %arg2: i32) -> (i32, i32, i32) {
    %c0_i32 = arith.constant 0 : i32
    %c0_i32_0 = arith.constant 0 : i32
    return %arg0, %c0_i32, %arg2 : i32, i32, i32
  }
  func.func @transform_2(%arg0: i32, %arg1: i32, %arg2: i32) -> (i32, i32, i32) {
    %0 = arith.muli %arg1, %arg2 : i32
    %c0_i32 = arith.constant 0 : i32
    %c0_i32_0 = arith.constant 0 : i32
    return %arg0, %c0_i32, %0 : i32, i32, i32
  }
}

</mosaic_0001>

<llo_original>
// kernel: tpu_custom_call.1
$region0: #{tpu_custom_call.1}
  #allocation0 [shape = 'u32[]', space=smem, size = 0x4, offset = 0x4, fixed_abs, tag = 'smem constant byte address 0x4 - core index']
  #allocation1 [shape = 'u32[144,128]{1,0:T(1,128)}', space=vmem, size = 0x12000, scoped, tag = 'internal scratch']
  #allocation2 [shape = 'f32[2,4,4]{2,1,0:T(4,128)}', space=vmem, size = 0x1000, scoped, tag = 'scratch operand']
  #allocation3 [shape = 'f32[1]{0:T(128)S(6)}', space=smem, size = 0x200, scoped, tag = 'scoped memory for tpu_custom_call.1']
  %s0 = inlined_call_operand.<no memory space> [shape: f32[1], index: 0, kind: input, shape index: {}]
  %s1 = inlined_call_operand.hbm [shape: f32[2,4,256], index: 1, kind: input, shape index: {}]
  %s2 = inlined_call_operand.hbm [shape: f32[2,4,256], index: 2, kind: output, shape index: {}]
  %s3 = sld [smem:[#allocation0]]
  $region61: #{tpu_custom_call.1} parent=0
    _
  %s5 = ssub.s32 1, %s3
  %s6 = scalar_select 0, %s5, %s3
  %7 = sst [smem:[#allocation3]] %s0
  $region1: #{tpu_custom_call.1} parent=0
    #allocation4 [shape = 'u8[8192]{0}', space=vmem, size = 0x2000, scoped, tag = 'input window, operand 1, single buffered']
    #allocation5 [shape = 's32[2]{0}', space=sflag, size = 0x8, scoped, tag = 'scoped memory for tpu_custom_call.1']
    #allocation6 [shape = 's32[2]{0}', space=sflag, size = 0x8, scoped, tag = 'scoped memory for tpu_custom_call.1']
    #allocation7 [shape = 'u8[16384]{0}', space=vmem, size = 0x4000, scoped, tag = 'output window, operand 0']
    %8 = vsyncpa [#allocation5], 0
    %9 = vsyncpa [#allocation6], 0
    %s10 = scalar_lea.sflag [#allocation6], 1
    %11 = vsyncpa %s10, 0
    loop: start=0, step=1, limit=4
    $region2: #{tpu_custom_call.1} parent=1 // loop_pre_header
      _
    $region3: #{tpu_custom_call.1} parent=1 // loop_header
      %s13 = sphi 0, %s17
      %p14 = scmp.ge.s32.totalorder %s13, 4
      %s20 = sphi 0, %s39
      %s21 = sphi 0, %s35
      %s22 = sphi 0, %s31
      %s23 = sphi 0, %s20
      %s24 = sphi 0, %s21
      %s25 = sphi 0, %s22
      %s26 = sphi 0, %s23
      %s27 = sphi 0, %s24
      %s28 = sphi 0, %s25
      %s40 = sphi 0, %s40
      %s42 = sphi 0, %s40
      %s43 = sphi 0, %s42
      %s57 = sphi 0, %s43
      %s65 = sphi 0, %s67
      %s68 = sphi 0, %s65
      %s69 = sphi 0, %s68
      %s85 = sphi 0, %s69
      %s95 = sphi 0, %s97
      %s98 = sphi 0, %s95
      %s99 = sphi 0, %s98
      %s115 = sphi 0, %s99
    $region4: #{tpu_custom_call.1} parent=1 // loop_header_branch
      %16 = sbr.rel (%p14) target = $region8
    $region5: #{tpu_custom_call.1} parent=1 // loop_body
      %s18 = ssub.s32 %s13, 1
      %s19 = ssub.s32 %s13, 2
      %s29 = sadd.s32 1, %s22
      %p30 = scmp.ge.s32.totalorder %s29, 1
      %s31 = scalar_select %p30, 0, %s29
      %s32 = sadd.s32 1, %s21
      %s33 = scalar_select %p30, %s32, %s21
      %p34 = scmp.ge.s32.totalorder %s33, 2
      %s35 = scalar_select %p34, 0, %s33
      %s36 = sadd.s32 1, %s20
      %s37 = scalar_select %p34, %s36, %s20
      %p38 = scmp.ge.s32.totalorder %s37, 1
      %s39 = scalar_select %p38, 0, %s37
      %s41 = sadd.s32 %s40, 1
      %p44 = scmp.eq.s32.totalorder %s13, 1
      %p45 = scmp.ne.s32.totalorder %s40, %s42
      %p46 = scmp.eq.s32.totalorder %s13, 0
      %p47 = por %p45, %p46
      %p48 = scmp.ne.s32.totalorder %s40, %s42
      %p49 = scmp.eq.s32.totalorder %s18, 1
      %p50 = por %p48, %p49
      %p51 = scmp.ne.s32.totalorder %s42, %s43
      %p52 = scmp.eq.s32.totalorder %s18, 0
      %p53 = por %p51, %p52
      %p54 = scmp.ne.s32.totalorder %s42, %s43
      %p55 = scmp.eq.s32.totalorder %s19, 1
      %p56 = por %p54, %p55
      %p58 = scmp.ne.s32.totalorder %s43, %s57
      %p59 = scmp.eq.s32.totalorder %s19, 0
      %p60 = por %p58, %p59
      %s61 = ssub.s32 %s20, %s39
      %s62 = ssub.s32 %s22, %s31
      %s63 = sor.u32 %s61, %s62
      %p64 = scmp.eq.s32.totalorder %s63, 0
      %s66 = sadd.s32 %s65, 1
      %s67 = scalar_select %p64, %s65, %s66
      %p70 = pneg %p64
      %p71 = scmp.eq.s32.totalorder %s13, 1
      %p72 = por %p70, %p71
      %p73 = scmp.ne.s32.totalorder %s65, %s68
      %p74 = scmp.eq.s32.totalorder %s13, 0
      %p75 = por %p73, %p74
      %p76 = scmp.ne.s32.totalorder %s65, %s68
      %p77 = scmp.eq.s32.totalorder %s18, 1
      %p78 = por %p76, %p77
      %p79 = scmp.ne.s32.totalorder %s68, %s69
      %p80 = scmp.eq.s32.totalorder %s18, 0
      %p81 = por %p79, %p80
      %p82 = scmp.ne.s32.totalorder %s68, %s69
      %p83 = scmp.eq.s32.totalorder %s19, 1
      %p84 = por %p82, %p83
      %p86 = scmp.ne.s32.totalorder %s69, %s85
      %p87 = scmp.eq.s32.totalorder %s19, 0
      %p88 = por %p86, %p87
      %s89 = smul.u32 %s21, %s22
      %s90 = smul.u32 %s35, %s31
      %s91 = ssub.s32 %s20, %s39
      %s92 = ssub.s32 %s89, %s90
      %s93 = sor.u32 %s91, %s92
      %p94 = scmp.eq.s32.totalorder %s93, 0
      %s96 = sadd.s32 %s95, 1
      %s97 = scalar_select %p94, %s95, %s96
      %p100 = pneg %p94
      %p101 = scmp.eq.s32.totalorder %s13, 1
      %p102 = por %p100, %p101
      %p103 = scmp.ne.s32.totalorder %s95, %s98
      %p104 = scmp.eq.s32.totalorder %s13, 0
      %p105 = por %p103, %p104
      %p106 = scmp.ne.s32.totalorder %s95, %s98
      %p107 = scmp.eq.s32.totalorder %s18, 1
      %p108 = por %p106, %p107
      %p109 = scmp.ne.s32.totalorder %s98, %s99
      %p110 = scmp.eq.s32.totalorder %s18, 0
      %p111 = por %p109, %p110
      %p112 = scmp.ne.s32.totalorder %s98, %s99
      %p113 = scmp.eq.s32.totalorder %s19, 1
      %p114 = por %p112, %p113
      %p116 = scmp.ne.s32.totalorder %s99, %s115
      %p117 = scmp.eq.s32.totalorder %s19, 0
      %p118 = por %p116, %p117
      %p119 = scmp.le.s32.totalorder 1, %s13
      %p120 = scmp.lt.s32.totalorder %s13, 3
      %p121 = pnand %p119, %p120
      %p122 = pneg %p121
      // Predicated region
      $region9: #{tpu_custom_call.1} parent=5 // pred_check
        _
      $region10: #{tpu_custom_call.1} parent=5 // pred_check_branch
        %124 = sbr.rel (%p121) target = $region12
      $region11: #{tpu_custom_call.1} parent=5 // pred_region
        %s125 = ssub.s32 %s13, 1
        // Predicated region
        $region13: #{tpu_custom_call.1} parent=11 // pred_check
          %p126 = pneg %p53
        $region14: #{tpu_custom_call.1} parent=11 // pred_check_branch
          %128 = sbr.rel (%p126) target = $region16
        $region15: #{tpu_custom_call.1} parent=11 // pred_region
          _
        $region16: #{tpu_custom_call.1} parent=11 // pred_fallthru
          _
        // Predicated region
        $region17: #{tpu_custom_call.1} parent=11 // pred_check
          %p129 = pneg %p81
        $region18: #{tpu_custom_call.1} parent=11 // pred_check_branch
          %131 = sbr.rel (%p129) target = $region20
        $region19: #{tpu_custom_call.1} parent=11 // pred_region
          %s132 = smul.u32 2, %s23
          %s133 = smul.u32 2, %s25
          %s135 = ssub.s32 256, 256
          %136 = vsyncadd [#allocation5], %s135
          %s137 = smul.addr %s132, 2
          %s138 = sadd.s32 %s133, %s137
          %s139 = smul.addr %s138, 64
          %s140 = scalar_lea.hbm %s1, %s139
          %s141 = sshll.u32 [#allocation4], 4
          %s142 = int_to_ptr.vmem [resolvable:$true] %s141
          %147 = dma.hbm_to_vmem [thread:$0]  %s140, 256, %s142, [#allocation5], 128, 128, 8
        $region20: #{tpu_custom_call.1} parent=11 // pred_fallthru
          _
      $region12: #{tpu_custom_call.1} parent=5 // pred_fallthru
        _
      %p148 = scmp.lt.s32.totalorder %s13, 2
      // Predicated region
      $region21: #{tpu_custom_call.1} parent=5 // pred_check
        %p149 = pneg %p148
      $region22: #{tpu_custom_call.1} parent=5 // pred_check_branch
        %151 = sbr.rel (%p149) target = $region24
      $region23: #{tpu_custom_call.1} parent=5 // pred_region
        _
      $region24: #{tpu_custom_call.1} parent=5 // pred_fallthru
        _
      %p152 = scmp.le.s32.totalorder 1, %s13
      %p153 = scmp.lt.s32.totalorder %s13, 3
      %p154 = pnand %p152, %p153
      %p155 = pneg %p154
      // Predicated region
      $region25: #{tpu_custom_call.1} parent=5 // pred_check
        _
      $region26: #{tpu_custom_call.1} parent=5 // pred_check_branch
        %157 = sbr.rel (%p154) target = $region28
      $region27: #{tpu_custom_call.1} parent=5 // pred_region
        %s158 = ssub.s32 %s13, 1
        // Predicated region
        $region29: #{tpu_custom_call.1} parent=27 // pred_check
          %p159 = pneg %p81
        $region30: #{tpu_custom_call.1} parent=27 // pred_check_branch
          %161 = sbr.rel (%p159) target = $region32
        $region31: #{tpu_custom_call.1} parent=27 // pred_region
          %162 = dma.done [#allocation5], 256
        $region32: #{tpu_custom_call.1} parent=27 // pred_fallthru
          _
        %p163 = pneg %p53
        %p164 = pneg %p50
        %p165 = pneg %p81
        %p166 = pneg %p78
        %p167 = pneg %p111
        %p168 = pneg %p108
        %s169 = sand.u32 %s98, 1
        %s170 = scalar_lea.sflag [#allocation6], %s169
        %s171 = sand.u32 %s98, 1
        %s172 = smul.addr %s171, 16
        %s173 = scalar_lea.vmem [#allocation7], %s172
        %s174 = smul.u32 2, %s23
        %s175 = smul.u32 2, %s25
        %s176 = smul.u32 %s24, %s25
        %s177 = smul.u32 2, %s23
        %s178 = smul.u32 2, %s176
        %p180 = scmp.eq.s32.totalorder %s24, 0
        %p181 = scmp.eq.s32.totalorder %s25, 0
        %p182 = pnand %p180, %p181
        %p183 = pneg %p182
        // Predicated region
        $region33: #{tpu_custom_call.1} parent=27 // pred_check
          _
        $region34: #{tpu_custom_call.1} parent=27 // pred_check_branch
          %185 = sbr.rel (%p182) target = $region36
        $region35: #{tpu_custom_call.1} parent=27 // pred_region
          %vm186 = vcmask 27648
          %187 = vst.msk [vmem:[#allocation2] sm:$0xf] %vm186, 0.0
          %188 = vst.msk [vmem:[#allocation2 + $0x4] sm:$0xf] %vm186, 0.0
        $region36: #{tpu_custom_call.1} parent=27 // pred_fallthru
          _
        // Predicated region
        $region37: #{tpu_custom_call.1} parent=27 // pred_check
          %p189 = pneg %p180
        $region38: #{tpu_custom_call.1} parent=27 // pred_check_branch
          %191 = sbr.rel (%p189) target = $region40
        $region39: #{tpu_custom_call.1} parent=27 // pred_region
          %v192 = vld [vmem:[#allocation4] sm:$0xff]
          %v193 = vld [vmem:[#allocation4 + $0x8] sm:$0xff]
          %v196 = vcombine.high %v192, %v192
          %v197 = vcombine.high %v193, %v193
          %v200 = vpack.c.bf16 %v192, %v192
          %v201 = vpack.c.bf16 %v196, %v196
          %v202 = vpack.c.bf16 %v193, %v193
          %v203 = vpack.c.bf16 %v197, %v197
          %v204 = vld [vmem:[#allocation2] sm:$0xf]
          %v205 = vld [vmem:[#allocation2 + $0x4] sm:$0xf]
          %206 = vmatprep.subr.bf16.mxu0 %v201
          %207 = vmatpush1.bf16.xpose.msra.mxu0 %v200
          %208 = vmatprep.subr.bf16.mxu0 0
          %209 = vmatpush1.bf16.xpose.msra.mxu0 0
          %210 = vmatprep.subr.bf16.mxu0 0
          %211 = vmatpush1.bf16.xpose.msra.mxu0 0
          %212 = vmatprep.subr.bf16.mxu0 0
          %213 = vmatpush1.bf16.xpose.msra.mxu0 0
          %214 = vmatprep.subr.bf16.mxu0 0
          %215 = vmatpush1.bf16.xpose.msra.mxu0 0
          %216 = vmatprep.subr.bf16.mxu0 0
          %217 = vmatpush1.bf16.xpose.msra.mxu0 0
          %218 = vmatprep.subr.bf16.mxu0 0
          %219 = vmatpush1.bf16.xpose.msra.mxu0 0
          %220 = vmatprep.subr.bf16.mxu0 0
          %221 = vmatpush1.bf16.xpose.msra.mxu0 0
          %222 = vmatprep.subr.bf16.mxu0 0
          %223 = vmatpush1.bf16.xpose.msra.mxu0 0
          %224 = vmatprep.subr.bf16.mxu0 0
          %225 = vmatpush1.bf16.xpose.msra.mxu0 0
          %226 = vmatprep.subr.bf16.mxu0 0
          %227 = vmatpush1.bf16.xpose.msra.mxu0 0
          %228 = vmatprep.subr.bf16.mxu0 0
          %229 = vmatpush1.bf16.xpose.msra.mxu0 0
          %230 = vmatprep.subr.bf16.mxu0 0
          %231 = vmatpush1.bf16.xpose.msra.mxu0 0
          %232 = vmatprep.subr.bf16.mxu0 0
          %233 = vmatpush1.bf16.xpose.msra.mxu0 0
          %234 = vmatprep.subr.bf16.mxu0 0
          %235 = vmatpush1.bf16.xpose.msra.mxu0 0
          %236 = vmatprep.subr.bf16.mxu0 0
          %237 = vmatpush1.bf16.xpose.msra.mxu0 0
          %238 = vmatprep.mubr.bf16.mxu0 %v201
          %239 = vmatmul.mubr.bf16.gmra.mrb[0].mxu0 %v200
          %v240 = vpop.f32.mrb[0].mxu0
          %v241 = vadd.f32 0.0, %v240
          %v242 = vpop.f32.mrb[0].mxu0
          %v243 = vpop.f32.mrb[0].mxu0
          %v244 = vpop.f32.mrb[0].mxu0
          %245 = vdwg.mxu0
          %246 = vmatprep.subr.bf16.mxu0 %v203
          %247 = vmatpush1.bf16.xpose.msra.mxu0 %v202
          %248 = vmatprep.subr.bf16.mxu0 0
          %249 = vmatpush1.bf16.xpose.msra.mxu0 0
          %250 = vmatprep.subr.bf16.mxu0 0
          %251 = vmatpush1.bf16.xpose.msra.mxu0 0
          %252 = vmatprep.subr.bf16.mxu0 0
          %253 = vmatpush1.bf16.xpose.msra.mxu0 0
          %254 = vmatprep.subr.bf16.mxu0 0
          %255 = vmatpush1.bf16.xpose.msra.mxu0 0
          %256 = vmatprep.subr.bf16.mxu0 0
          %257 = vmatpush1.bf16.xpose.msra.mxu0 0
          %258 = vmatprep.subr.bf16.mxu0 0
          %259 = vmatpush1.bf16.xpose.msra.mxu0 0
          %260 = vmatprep.subr.bf16.mxu0 0
          %261 = vmatpush1.bf16.xpose.msra.mxu0 0
          %262 = vmatprep.subr.bf16.mxu0 0
          %263 = vmatpush1.bf16.xpose.msra.mxu0 0
          %264 = vmatprep.subr.bf16.mxu0 0
          %265 = vmatpush1.bf16.xpose.msra.mxu0 0
          %266 = vmatprep.subr.bf16.mxu0 0
          %267 = vmatpush1.bf16.xpose.msra.mxu0 0
          %268 = vmatprep.subr.bf16.mxu0 0
          %269 = vmatpush1.bf16.xpose.msra.mxu0 0
          %270 = vmatprep.subr.bf16.mxu0 0
          %271 = vmatpush1.bf16.xpose.msra.mxu0 0
          %272 = vmatprep.subr.bf16.mxu0 0
          %273 = vmatpush1.bf16.xpose.msra.mxu0 0
          %274 = vmatprep.subr.bf16.mxu0 0
          %275 = vmatpush1.bf16.xpose.msra.mxu0 0
          %276 = vmatprep.subr.bf16.mxu0 0
          %277 = vmatpush1.bf16.xpose.msra.mxu0 0
          %278 = vmatprep.mubr.bf16.mxu0 %v203
          %279 = vmatmul.mubr.bf16.gmra.mrb[0].mxu0 %v202
          %v280 = vpop.f32.mrb[0].mxu0
          %v281 = vadd.f32 0.0, %v280
          %v282 = vpop.f32.mrb[0].mxu0
          %v283 = vpop.f32.mrb[0].mxu0
          %v284 = vpop.f32.mrb[0].mxu0
          %285 = vdwg.mxu0
          %v286 = vadd.f32 %v204, %v241
          %v287 = vadd.f32 %v205, %v281
          %vm288 = vcmask 27648
          %289 = vst.msk [vmem:[#allocation2] sm:$0xf] %vm288, %v286
          %290 = vst.msk [vmem:[#allocation2 + $0x4] sm:$0xf] %vm288, %v287
        $region40: #{tpu_custom_call.1} parent=27 // pred_fallthru
          _
        // Predicated region
        $region41: #{tpu_custom_call.1} parent=27 // pred_check
          _
        $region42: #{tpu_custom_call.1} parent=27 // pred_check_branch
          %292 = sbr.rel (%p182) target = $region44
        $region43: #{tpu_custom_call.1} parent=27 // pred_region
          %v293 = vld [vmem:[#allocation2] sm:$0xf]
          %v294 = vld [vmem:[#allocation2 + $0x4] sm:$0xf]
          %vm295 = vcmask 27648
          %v296 = vsel %vm295, %v293, inf
          %297 = vmin.xlane.f32.xlu0 %v296
          %v298 = vpop.xlane.xlu0 %297
          %v299 = vsel %vm295, %v294, inf
          %300 = vmin.xlane.f32.xlu0 %v299
          %v301 = vpop.xlane.xlu0 %300
          %v302 = vsub.f32 %v298, %v293
          %v303 = vsub.f32 %v301, %v294
          %v304 = vmul.f32 %v302, 1.442695
          %v305 = vpow.pop %v304
          %v306 = vmul.f32 %v303, 1.442695
          %v307 = vpow.pop %v306
          %v308 = vsel %vm295, %v305, 0.0
          %309 = vadd.xlane.f32.xlu0 %v308
          %v310 = vpop.xlane.xlu0 %309
          %v311 = vsel %vm295, %v307, 0.0
          %312 = vadd.xlane.f32.xlu0 %v311
          %v313 = vpop.xlane.xlu0 %312
          %v314 = vrcp.pop %v310
          %v315 = vrcp.pop %v313
          %v316 = vmul.f32 %v305, %v314
          %v317 = vmul.f32 %v307, %v315
          %318 = vst.msk [vmem:[#allocation2] sm:$0xf] %vm295, %v316
          %319 = vst.msk [vmem:[#allocation2 + $0x4] sm:$0xf] %vm295, %v317
        $region44: #{tpu_custom_call.1} parent=27 // pred_fallthru
          _
        %p320 = scmp.eq.s32.totalorder %s24, 1
        // Predicated region
        $region45: #{tpu_custom_call.1} parent=27 // pred_check
          %p321 = pneg %p320
        $region46: #{tpu_custom_call.1} parent=27 // pred_check_branch
          %323 = sbr.rel (%p321) target = $region48
        $region47: #{tpu_custom_call.1} parent=27 // pred_region
          %v324 = vld [vmem:[#allocation4] sm:$0xff]
          %v325 = vld [vmem:[#allocation4 + $0x8] sm:$0xff]
          %v326 = vld [vmem:[#allocation2] sm:$0xf]
          %v327 = vld [vmem:[#allocation2 + $0x4] sm:$0xf]
          %v328 = vpack.c.bf16 %v326, %v326
          %v329 = vpack.c.bf16 %v327, %v327
          %v332 = vcombine.high %v324, %v324
          %v333 = vcombine.high %v325, %v325
          %v336 = vpack.c.bf16 %v324, %v324
          %v337 = vpack.c.bf16 %v332, %v332
          %v338 = vpack.c.bf16 %v325, %v325
          %v339 = vpack.c.bf16 %v333, %v333
          %vm340 = vcmask 31744
          %v342 = vsel %vm340, %v328, 0
          %vm344 = vcmask 1041408
          %v346 = vsel %vm344, %v336, 0
          %v349 = vsel %vm344, %v337, 0
          %351 = vmatprep.subr.bf16.mxu0 %v349
          %352 = vmatpush1.bf16.msra.mxu0 %v346
          %353 = vmatprep.subr.bf16.mxu0 0
          %354 = vmatpush1.bf16.msra.mxu0 0
          %355 = vmatprep.subr.bf16.mxu0 0
          %356 = vmatpush1.bf16.msra.mxu0 0
          %357 = vmatprep.subr.bf16.mxu0 0
          %358 = vmatpush1.bf16.msra.mxu0 0
          %359 = vmatprep.subr.bf16.mxu0 0
          %360 = vmatpush1.bf16.msra.mxu0 0
          %361 = vmatprep.subr.bf16.mxu0 0
          %362 = vmatpush1.bf16.msra.mxu0 0
          %363 = vmatprep.subr.bf16.mxu0 0
          %364 = vmatpush1.bf16.msra.mxu0 0
          %365 = vmatprep.subr.bf16.mxu0 0
          %366 = vmatpush1.bf16.msra.mxu0 0
          %367 = vmatprep.subr.bf16.mxu0 0
          %368 = vmatpush1.bf16.msra.mxu0 0
          %369 = vmatprep.subr.bf16.mxu0 0
          %370 = vmatpush1.bf16.msra.mxu0 0
          %371 = vmatprep.subr.bf16.mxu0 0
          %372 = vmatpush1.bf16.msra.mxu0 0
          %373 = vmatprep.subr.bf16.mxu0 0
          %374 = vmatpush1.bf16.msra.mxu0 0
          %375 = vmatprep.subr.bf16.mxu0 0
          %376 = vmatpush1.bf16.msra.mxu0 0
          %377 = vmatprep.subr.bf16.mxu0 0
          %378 = vmatpush1.bf16.msra.mxu0 0
          %379 = vmatprep.subr.bf16.mxu0 0
          %380 = vmatpush1.bf16.msra.mxu0 0
          %381 = vmatprep.subr.bf16.mxu0 0
          %382 = vmatpush1.bf16.msra.mxu0 0
          %383 = vmatprep.mubr.bf16.mxu0 0
          %384 = vmatmul.mubr.bf16.gmra.mrb[0].mxu0 %v342
          %v385 = vpop.f32.mrb[0].mxu0
          %v386 = vadd.f32 0.0, %v385
          %v387 = vpop.f32.mrb[0].mxu0
          %v388 = vadd.f32 0.0, %v387
          %v389 = vpop.f32.mrb[0].mxu0
          %v390 = vpop.f32.mrb[0].mxu0
          %391 = vdwg.mxu0
          %v393 = vsel %vm340, %v329, 0
          %v396 = vsel %vm344, %v338, 0
          %v399 = vsel %vm344, %v339, 0
          %401 = vmatprep.subr.bf16.mxu0 %v399
          %402 = vmatpush1.bf16.msra.mxu0 %v396
          %403 = vmatprep.subr.bf16.mxu0 0
          %404 = vmatpush1.bf16.msra.mxu0 0
          %405 = vmatprep.subr.bf16.mxu0 0
          %406 = vmatpush1.bf16.msra.mxu0 0
          %407 = vmatprep.subr.bf16.mxu0 0
          %408 = vmatpush1.bf16.msra.mxu0 0
          %409 = vmatprep.subr.bf16.mxu0 0
          %410 = vmatpush1.bf16.msra.mxu0 0
          %411 = vmatprep.subr.bf16.mxu0 0
          %412 = vmatpush1.bf16.msra.mxu0 0
          %413 = vmatprep.subr.bf16.mxu0 0
          %414 = vmatpush1.bf16.msra.mxu0 0
          %415 = vmatprep.subr.bf16.mxu0 0
          %416 = vmatpush1.bf16.msra.mxu0 0
          %417 = vmatprep.subr.bf16.mxu0 0
          %418 = vmatpush1.bf16.msra.mxu0 0
          %419 = vmatprep.subr.bf16.mxu0 0
          %420 = vmatpush1.bf16.msra.mxu0 0
          %421 = vmatprep.subr.bf16.mxu0 0
          %422 = vmatpush1.bf16.msra.mxu0 0
          %423 = vmatprep.subr.bf16.mxu0 0
          %424 = vmatpush1.bf16.msra.mxu0 0
          %425 = vmatprep.subr.bf16.mxu0 0
          %426 = vmatpush1.bf16.msra.mxu0 0
          %427 = vmatprep.subr.bf16.mxu0 0
          %428 = vmatpush1.bf16.msra.mxu0 0
          %429 = vmatprep.subr.bf16.mxu0 0
          %430 = vmatpush1.bf16.msra.mxu0 0
          %431 = vmatprep.subr.bf16.mxu0 0
          %432 = vmatpush1.bf16.msra.mxu0 0
          %433 = vmatprep.mubr.bf16.mxu0 0
          %434 = vmatmul.mubr.bf16.gmra.mrb[0].mxu0 %v393
          %v435 = vpop.f32.mrb[0].mxu0
          %v436 = vadd.f32 0.0, %v435
          %v437 = vpop.f32.mrb[0].mxu0
          %v438 = vadd.f32 0.0, %v437
          %v439 = vpop.f32.mrb[0].mxu0
          %v440 = vpop.f32.mrb[0].mxu0
          %441 = vdwg.mxu0
          %s442 = sld [smem:[#allocation3]]
          %v443 = vstv %s442
          %v444 = vmul.f32 %v443, %v386
          %v445 = vmul.f32 %v443, %v388
          %v446 = vmul.f32 %v443, %v436
          %v447 = vmul.f32 %v443, %v438
          %v448 = vadd.f32 %v444, %v324
          %v449 = vadd.f32 %v445, %v332
          %v450 = vadd.f32 %v446, %v325
          %v451 = vadd.f32 %v447, %v333
          %v456 = vcombine.low %v448, %v449
          %v457 = vcombine.low %v450, %v451
          %460 = vst [vmem:[%s173] sm:$0xff] %v456
          %461 = vst [vmem:[%s173 + $0x8] sm:$0xff] %v457
        $region48: #{tpu_custom_call.1} parent=27 // pred_fallthru
          _
        %s462 = sand.u32 %s98, 1
        %s463 = scalar_lea.sflag [#allocation6], %s462
        %s464 = sand.u32 %s98, 1
        %s465 = smul.addr %s464, 16
        %s466 = scalar_lea.vmem [#allocation7], %s465
        // Predicated region
        $region49: #{tpu_custom_call.1} parent=27 // pred_check
          %p467 = pneg %p108
        $region50: #{tpu_custom_call.1} parent=27 // pred_check_branch
          %469 = sbr.rel (%p467) target = $region52
        $region51: #{tpu_custom_call.1} parent=27 // pred_region
          %s470 = smul.u32 %s24, %s25
          %s471 = smul.u32 2, %s23
          %s472 = smul.u32 2, %s470
          %s474 = ssub.s32 256, 256
          %475 = vsyncadd %s463, %s474
          %s476 = smul.addr %s471, 2
          %s477 = sadd.s32 %s472, %s476
          %s478 = smul.addr %s477, 64
          %s479 = scalar_lea.hbm %s2, %s478
          %s480 = sshll.u32 %s466, 4
          %s481 = int_to_ptr.vmem [resolvable:$true] %s480
          %486 = dma.vmem_to_hbm [thread:$0]  %s481, 256, %s479, %s463, 128, 128, 8
        $region52: #{tpu_custom_call.1} parent=27 // pred_fallthru
          _
      $region28: #{tpu_custom_call.1} parent=5 // pred_fallthru
        _
      %p487 = scmp.le.s32.totalorder 2, %s13
      // Predicated region
      $region53: #{tpu_custom_call.1} parent=5 // pred_check
        %p488 = pneg %p487
      $region54: #{tpu_custom_call.1} parent=5 // pred_check_branch
        %490 = sbr.rel (%p488) target = $region56
      $region55: #{tpu_custom_call.1} parent=5 // pred_region
        %s491 = ssub.s32 %s13, 2
        // Predicated region
        $region57: #{tpu_custom_call.1} parent=55 // pred_check
          %p492 = pneg %p114
        $region58: #{tpu_custom_call.1} parent=55 // pred_check_branch
          %494 = sbr.rel (%p492) target = $region60
        $region59: #{tpu_custom_call.1} parent=55 // pred_region
          %s495 = sand.u32 %s99, 1
          %s496 = scalar_lea.sflag [#allocation6], %s495
          %s497 = sand.u32 %s99, 1
          %s498 = smul.addr %s497, 16
          %s499 = scalar_lea.vmem [#allocation7], %s498
          %500 = dma.done %s496, 256
        $region60: #{tpu_custom_call.1} parent=55 // pred_fallthru
          _
      $region56: #{tpu_custom_call.1} parent=5 // pred_fallthru
        _
    $region6: #{tpu_custom_call.1} parent=1 // loop_footer
      %s17 = sadd.s32 1, %s13
    $region7: #{tpu_custom_call.1} parent=1 // loop_footer_branch
      %12 = sbr.rel target = $region3
    $region8: #{tpu_custom_call.1} parent=1 // loop_exit
      _
    %501 = vsyncpa [#allocation5], 1
    %s502 = scalar_lea.sflag [#allocation5], 1
    %503 = vsyncpa %s502, 1
    %504 = vsyncpa [#allocation6], 1
    %s505 = scalar_lea.sflag [#allocation6], 1
    %506 = vsyncpa %s505, 1

</llo_original>
